<compile_context>
chip_gen: v6e
topology: v6e:2x2x1
jax: 0.10.0
libtpu: 0.0.40
codegen_flags: <defaults>
</compile_context>

<pallas_src>
from functools import partial

import jax
import jax.numpy as jnp
from jax.experimental import pallas as pl
from jax.experimental.pallas import tpu as pltpu


_LANES = 128
_NEG_BIG = -1e30  # bias for padded class lanes: exp(-1e30 - m) underflows to 0


def _round_up(x, m):
    return ((x + m - 1) // m) * m


def _vmem_limit_bytes():
    """Generation-aware VMEM limit: ~75% of physical VMEM (96 MiB on the
    128 MiB v5e/v6e, 48 MiB on the 64 MiB v7x), capped defensively."""
    try:
        cap = int(pltpu.get_tpu_info().vmem_capacity_bytes)
    except Exception:
        cap = 64 * 1024 * 1024          # conservative (v7x) default
    return min(cap * 3 // 4, 112 * 1024 * 1024)


def _pick_tile_m(n_pad, vmem_limit, resident_bytes, per_row_bytes):
    """Largest multiple of 128 rows such that the *double-buffered* streamed
    tiles plus the resident blocks fit the VMEM limit (with 10% headroom)."""
    avail = int(vmem_limit * 0.9) - resident_bytes
    tm = max(_LANES, (avail // max(per_row_bytes, 1)) // _LANES * _LANES)
    tm = min(tm, n_pad)
    while n_pad % tm:
        tm -= _LANES
    return max(_LANES, tm)


def _cost_kwargs(flops, bytes_accessed, transcendentals=0):
    if hasattr(pl, "CostEstimate"):
        return dict(cost_estimate=pl.CostEstimate(
            flops=int(flops), transcendentals=int(transcendentals),
            bytes_accessed=int(bytes_accessed)))
    return {}


def _tiled(shape, tm):
    return pl.BlockSpec((tm, shape[1]), lambda i: (i, 0))


def _resident(shape):
    """Constant-index (fetched once) resident block; single-buffered when the
    running JAX version supports pl.Buffered so it doesn't cost 2x VMEM."""
    if hasattr(pl, "Buffered"):
        try:
            return pl.BlockSpec(shape, lambda i: (0, 0),
                                pipeline_mode=pl.Buffered(1))
        except TypeError:
            pass
    return pl.BlockSpec(shape, lambda i: (0, 0))


# ---------------------------------------------------------------------------
# Pallas kernels
# ---------------------------------------------------------------------------
def _fused_kernel(a_ref, x_ref, w1_ref, b1_ref, w2_ref, b2_ref, wfch_ref,
                  xfc_ref, h2_ref, logp_ref):
    """Whole GCN stage with A_hat resident in VMEM (read from HBM once)."""
    bf16 = jnp.bfloat16
    a = a_ref[...]
    z1 = jnp.dot(x_ref[...], w1_ref[...], preferred_element_type=jnp.float32)
    h1 = jnp.maximum(
        jnp.dot(a, z1.astype(bf16), preferred_element_type=jnp.float32)
        + b1_ref[...], 0.0)
    z2 = jnp.dot(h1.astype(bf16), w2_ref[...],
                 preferred_element_type=jnp.float32)
    h2 = jnp.dot(a, z2.astype(bf16), preferred_element_type=jnp.float32) \
        + b2_ref[...]
    h2_ref[...] = h2
    logits = jnp.dot(h2.astype(bf16), wfch_ref[...],
                     preferred_element_type=jnp.float32) + xfc_ref[...]
    m = jnp.max(logits, axis=1, keepdims=True)
    s = logits - m
    lse = jnp.log(jnp.sum(jnp.exp(s), axis=1, keepdims=True))
    logp_ref[...] = s - lse


def _xw1_kernel(x_ref, w1_ref, z1_ref):
    # z1 = x @ W1   (row tile)
    z1_ref[...] = jnp.dot(x_ref[...], w1_ref[...],
                          preferred_element_type=jnp.float32).astype(z1_ref.dtype)


def _conv1_kernel(a_ref, z1_ref, b1_ref, w2_ref, z2_ref):
    # h1 = relu(A_tile @ z1_full + b1) ;  z2 = h1 @ W2
    h1 = jnp.maximum(
        jnp.dot(a_ref[...], z1_ref[...], preferred_element_type=jnp.float32)
        + b1_ref[...], 0.0)
    z2_ref[...] = jnp.dot(h1.astype(w2_ref.dtype), w2_ref[...],
                          preferred_element_type=jnp.float32).astype(z2_ref.dtype)


def _conv2_fc_kernel(a_ref, z2_ref, b2_ref, wfch_ref, xfc_ref, h2_ref, logp_ref):
    # h2 = A_tile @ z2_full + b2 ; logits = h2 @ Wfc_h + (x @ Wfc_x + bfc)
    h2 = jnp.dot(a_ref[...], z2_ref[...], preferred_element_type=jnp.float32) \
        + b2_ref[...]
    h2_ref[...] = h2
    logits = jnp.dot(h2.astype(wfch_ref.dtype), wfch_ref[...],
                     preferred_element_type=jnp.float32) + xfc_ref[...]
    m = jnp.max(logits, axis=1, keepdims=True)
    s = logits - m
    lse = jnp.log(jnp.sum(jnp.exp(s), axis=1, keepdims=True))
    logp_ref[...] = s - lse


# ---------------------------------------------------------------------------
# Wrapper
# ---------------------------------------------------------------------------
@partial(jax.jit, static_argnames=("force_tiled", "tile_rows"))
def gcn_forward(x, a_hat, params, *, force_tiled=False, tile_rows=None):
    """x: (n, F) f32 node features; a_hat: normalized adjacency — ideally
    already lane-padded bf16 (n_pad, n_pad) from build_normalized_adjacency.
    Returns (log_softmax(fc(cat([h2, x]))), cat([h2, x]))."""
    f32, bf16 = jnp.float32, jnp.bfloat16
    w1, b1, w2, b2, wfc, bfc = params
    n, f = x.shape
    hidden = w1.shape[1]
    c = wfc.shape[0]
    assert c <= _LANES and wfc.shape[1] == hidden + f

    hp = _round_up(hidden, _LANES)            # lane-dense hidden dim
    n_pad = max(_round_up(n, _LANES), _round_up(a_hat.shape[0], _LANES))
    vmem_limit = _vmem_limit_bytes()

    # ---- operand prep (small: only A is O(N^2) and arrives pre-padded) ----
    pad_a = n_pad - a_hat.shape[0]
    a_p = (jnp.pad(a_hat, ((0, pad_a), (0, pad_a))) if pad_a else a_hat).astype(bf16)
    x_p = jnp.pad(x, ((0, n_pad - n), (0, 0))).astype(bf16)

    w1_b = jnp.zeros((f, hp), f32).at[:, :hidden].set(w1).astype(bf16)
    b1_2d = jnp.zeros((1, hp), f32).at[0, :hidden].set(b1)
    w2_b = jnp.zeros((hp, hp), f32).at[:hidden, :hidden].set(w2).astype(bf16)
    b2_2d = jnp.zeros((1, hp), f32).at[0, :hidden].set(b2)
    wfc_h_b = jnp.zeros((hp, _LANES), f32).at[:hidden, :c].set(
        wfc[:, :hidden].T).astype(bf16)

    # x @ Wfc_x^T + bfc precomputed in XLA (F is tiny); padded class lanes get
    # -1e30 so they never affect the softmax.
    xfc = x @ wfc[:, hidden:].T + bfc                                  # (n, c) f32
    xfc_p = jnp.full((n_pad, _LANES), _NEG_BIG, f32).at[:n, :c].set(xfc)

    # ---- fused vs tiled decision (generation-aware VMEM budget) ----------
    fused_bytes = (n_pad * n_pad * 2                      # A (bf16, resident)
                   + n_pad * f * 2                        # x
                   + n_pad * hp * (2 + 2 + 4 + 4)         # z1,z2,h1,h2 temps
                   + n_pad * hp * 4                       # h2 out
                   + n_pad * _LANES * 4 * 2               # xfc in + logp out
                   + (f * hp + hp * hp + hp * _LANES) * 2 # weights
                   + (2 * hp + _LANES) * 4)               # biases
    use_fused = (not force_tiled) and fused_bytes <= int(0.75 * vmem_limit)

    if use_fused:
        # One kernel, A_hat read from HBM exactly once, intermediates in VMEM.
        flops = (2 * n_pad * f * hp + 4 * n_pad * n_pad * hp
                 + 2 * n_pad * hp * hp + 2 * n_pad * hp * _LANES)
        h2_pad, logp_pad = pl.pallas_call(
            _fused_kernel,
            out_shape=(jax.ShapeDtypeStruct((n_pad, hp), f32),
                       jax.ShapeDtypeStruct((n_pad, _LANES), f32)),
            compiler_params=pltpu.CompilerParams(vmem_limit_bytes=vmem_limit),
            **_cost_kwargs(flops, fused_bytes, transcendentals=n_pad * _LANES),
        )(a_p, x_p, w1_b, b1_2d, w2_b, b2_2d, wfc_h_b, xfc_p)
    else:
        # Row-tiled fallback for graphs whose A_hat does not fit in VMEM.
        # Tile accounting: streamed tiles are double-buffered, residents are
        # single-buffered (pl.Buffered(1)).
        resident_bytes = (n_pad * hp * 2        # resident z1 / z2 (bf16)
                          + hp * hp * 2         # W2
                          + hp * _LANES * 2     # Wfc_h
                          + 2 * hp * 4 + 65536) # biases + slack
        per_row_bytes = (2 * n_pad * 2                        # A tile (dbuf)
                         + 2 * _LANES * 4                     # xfc tile (dbuf)
                         + 2 * (hp * 4 + hp * 2 + _LANES * 4))  # out tiles (dbuf)
        if tile_rows is not None:
            assert tile_rows % _LANES == 0 and n_pad % tile_rows == 0
            tm = tile_rows
        else:
            tm = _pick_tile_m(n_pad, vmem_limit, resident_bytes, per_row_bytes)
        grid = (n_pad // tm,)

        # "parallel" shards row tiles across the 2 TensorCores on v7x
        # (needs >=2 grid steps per chip); no-op on v5e/v6e.
        cparams = pltpu.CompilerParams(
            dimension_semantics=("parallel",),
            vmem_limit_bytes=vmem_limit)

        # stage 1: z1 = x @ W1
        z1 = pl.pallas_call(
            _xw1_kernel,
            out_shape=jax.ShapeDtypeStruct((n_pad, hp), bf16),
            grid=grid,
            in_specs=[_tiled((n_pad, f), tm), _resident((f, hp))],
            out_specs=_tiled((n_pad, hp), tm),
            compiler_params=cparams,
            **_cost_kwargs(2 * n_pad * f * hp,
                           n_pad * f * 2 + f * hp * 2 + n_pad * hp * 2),
        )(x_p, w1_b)

        # stage 2: z2 = relu(A @ z1 + b1) @ W2
        z2 = pl.pallas_call(
            _conv1_kernel,
            out_shape=jax.ShapeDtypeStruct((n_pad, hp), bf16),
            grid=grid,
            in_specs=[_tiled((n_pad, n_pad), tm), _resident((n_pad, hp)),
                      _resident((1, hp)), _resident((hp, hp))],
            out_specs=_tiled((n_pad, hp), tm),
            compiler_params=cparams,
            **_cost_kwargs(2 * n_pad * n_pad * hp + 2 * n_pad * hp * hp,
                           n_pad * n_pad * 2 + 2 * n_pad * hp * 2),
        )(a_p, z1, b1_2d, w2_b)

        # stage 3: h2 = A @ z2 + b2 ; logits = h2 @ Wfc_h + xfc ; log_softmax
        h2_pad, logp_pad = pl.pallas_call(
            _conv2_fc_kernel,
            out_shape=(jax.ShapeDtypeStruct((n_pad, hp), f32),
                       jax.ShapeDtypeStruct((n_pad, _LANES), f32)),
            grid=grid,
            in_specs=[_tiled((n_pad, n_pad), tm), _resident((n_pad, hp)),
                      _resident((1, hp)), _resident((hp, _LANES)),
                      _tiled((n_pad, _LANES), tm)],
            out_specs=(_tiled((n_pad, hp), tm),
                       _tiled((n_pad, _LANES), tm)),
            compiler_params=cparams,
            **_cost_kwargs(2 * n_pad * n_pad * hp + 2 * n_pad * hp * _LANES,
                           n_pad * n_pad * 2 + n_pad * hp * (2 + 4)
                           + 2 * n_pad * _LANES * 4,
                           transcendentals=n_pad * _LANES),
        )(a_p, z2, b2_2d, wfc_h_b, xfc_p)

    # ---- epilogue: drop padding, concat with ORIGINAL f32 x in XLA --------
    h2 = h2_pad[:n, :hidden]
    log_probs = logp_pad[:n, :c]
    x_copy = jnp.concatenate([h2, x], axis=1)
    return log_probs, x_copy


# ---------------------------------------------------------------------------
# Glue: dense normalized adjacency (GCNConv semantics) + deterministic params
# ---------------------------------------------------------------------------
def build_normalized_adjacency(edge_index, num_nodes, pad_to=None,
                               dtype=jnp.float32):
    """A_hat[dst, src] with self-loops on the real nodes and symmetric
    D^-1/2 normalization, built *directly* at the padded size and cast once
    (padded rows/cols are exactly zero)."""
    size = num_nodes if pad_to is None else pad_to
    adj = jnp.zeros((size, size), jnp.float32)
    adj = adj.at[edge_index[1], edge_index[0]].add(1.0)
    diag = (jnp.arange(size) < num_nodes).astype(jnp.float32)
    adj = adj.at[jnp.arange(size), jnp.arange(size)].add(diag)
    deg = jnp.sum(adj, axis=1)
    dinv = jnp.where(deg > 0, jax.lax.rsqrt(deg), 0.0)
    return (dinv[:, None] * adj * dinv[None, :]).astype(dtype)


def init_params(key, num_features, num_classes, hidden=64):
    k1, k2, k3, k4 = jax.random.split(key, 4)
    glorot = lambda k, fi, fo: jax.random.normal(k, (fi, fo), jnp.float32) * (
        (2.0 / (fi + fo)) ** 0.5)
    w1 = glorot(k1, num_features, hidden)
    b1 = jnp.zeros((hidden,), jnp.float32)
    w2 = glorot(k2, hidden, hidden)
    b2 = jnp.zeros((hidden,), jnp.float32)
    wfc = glorot(k3, num_classes, hidden + num_features)
    bfc = jax.random.normal(k4, (num_classes,), jnp.float32) * 0.01
    return (w1, b1, w2, b2, wfc, bfc)


# ---------------------------------------------------------------------------
# References
# ---------------------------------------------------------------------------
def reference_forward_f32(x, a_hat, params):
    """Pure-f32 module math (PyTorch semantics)."""
    w1, b1, w2, b2, wfc, bfc = params
    h1 = jnp.maximum(a_hat @ (x @ w1) + b1, 0.0)
    h2 = a_hat @ (h1 @ w2) + b2
    cat = jnp.concatenate([h2, x], axis=1)
    logits = cat @ wfc.T + bfc
    return jax.nn.log_softmax(logits, axis=1), cat


def reference_forward_bf16(x, a_hat, params, hidden):
    """Reference using the same bf16 matmul operands / f32 accumulation and
    the same XLA-side (f32) x @ Wfc_x + bfc term as the kernel."""
    bf = jnp.bfloat16
    w1, b1, w2, b2, wfc, bfc = params
    a = a_hat.astype(bf)
    xb = x.astype(bf)
    z1 = jnp.dot(xb, w1.astype(bf), preferred_element_type=jnp.float32).astype(bf)
    h1 = jnp.maximum(jnp.dot(a, z1, preferred_element_type=jnp.float32) + b1, 0.0)
    z2 = jnp.dot(h1.astype(bf), w2.astype(bf),
                 preferred_element_type=jnp.float32).astype(bf)
    h2 = jnp.dot(a, z2, preferred_element_type=jnp.float32) + b2
    xfc = x @ wfc[:, hidden:].T + bfc
    logits = jnp.dot(h2.astype(bf), wfc[:, :hidden].T.astype(bf),
                     preferred_element_type=jnp.float32) + xfc
    cat = jnp.concatenate([h2, x], axis=1)
    return jax.nn.log_softmax(logits, axis=1), cat


# ---------------------------------------------------------------------------
if __name__ == "__main__":
    NUM_NODES = 16
    NUM_FEATURES = 8
    NUM_CLASSES = 4
    HIDDEN = 64

    key = jax.random.PRNGKey(0)
    kx, ke, kp = jax.random.split(key, 3)

    # node features [N, F] and a random undirected edge_index [2, 2*E]
    x = jax.random.normal(kx, (NUM_NODES, NUM_FEATURES), jnp.float32)
    e_src = jax.random.randint(ke, (12,), 0, NUM_NODES)
    e_dst = jax.random.randint(jax.random.fold_in(ke, 1), (12,), 0, NUM_NODES)
    edge_index = jnp.stack([jnp.concatenate([e_src, e_dst]),
                            jnp.concatenate([e_dst, e_src])], axis=0)

    params = init_params(kp, NUM_FEATURES, NUM_CLASSES, HIDDEN)

    n_pad = _round_up(NUM_NODES, _LANES)
    a_pad_bf16 = build_normalized_adjacency(edge_index, NUM_NODES,
                                            pad_to=n_pad, dtype=jnp.bfloat16)
    a_f32 = build_normalized_adjacency(edge_index, NUM_NODES)   # reference only

    # ---- fused single-kernel path (A_hat resident, read from HBM once) ----
    log_probs, x_copy = gcn_forward(x, a_pad_bf16, params)
    jax.block_until_ready((log_probs, x_copy))

    ref_logp_b, ref_copy_b = reference_forward_bf16(x, a_f32, params, HIDDEN)
    assert jnp.allclose(log_probs, ref_logp_b, atol=5e-3, rtol=5e-3)
    assert jnp.allclose(x_copy, ref_copy_b, atol=5e-3, rtol=5e-3)

    ref_logp, ref_copy = reference_forward_f32(x, a_f32, params)
    assert jnp.allclose(log_probs, ref_logp, atol=5e-2, rtol=5e-2)
    assert jnp.allclose(x_copy, ref_copy, atol=5e-2, rtol=5e-2)

    assert log_probs.shape == (NUM_NODES, NUM_CLASSES)
    assert x_copy.shape == (NUM_NODES, HIDDEN + NUM_FEATURES)

    # ---- row-tiled fallback path (large-graph mode; forced here so both
    #      code paths are exercised: n_pad=256, tile=128 -> 2 grid steps) ----
    N2 = 200
    x2 = jax.random.normal(jax.random.fold_in(kx, 7), (N2, NUM_FEATURES),
                           jnp.float32)
    e2s = jax.random.randint(jax.random.fold_in(ke, 2), (300,), 0, N2)
    e2d = jax.random.randint(jax.random.fold_in(ke, 3), (300,), 0, N2)
    edge_index2 = jnp.stack([jnp.concatenate([e2s, e2d]),
                             jnp.concatenate([e2d, e2s])], axis=0)
    n_pad2 = _round_up(N2, _LANES)
    a2_pad = build_normalized_adjacency(edge_index2, N2, pad_to=n_pad2,
                                        dtype=jnp.bfloat16)
    a2_f32 = build_normalized_adjacency(edge_index2, N2)

    lp2, xc2 = gcn_forward(x2, a2_pad, params, force_tiled=True, tile_rows=128)
    jax.block_until_ready((lp2, xc2))

    r_lp2, r_xc2 = reference_forward_bf16(x2, a2_f32, params, HIDDEN)
    assert jnp.allclose(lp2, r_lp2, atol=1e-2, rtol=1e-2)
    assert jnp.allclose(xc2, r_xc2, atol=1e-2, rtol=1e-2)
    assert lp2.shape == (N2, NUM_CLASSES)
    assert xc2.shape == (N2, HIDDEN + NUM_FEATURES)

    print("KERNEL_OK")
</pallas_src>

<mosaic_0001>
module attributes {stable_mosaic.version = 11 : i64} {
  func.func @_fused_kernel(%arg0: memref<128x128xbf16, #tpu.memory_space<vmem>>, %arg1: memref<128x8xbf16, #tpu.memory_space<vmem>>, %arg2: memref<8x128xbf16, #tpu.memory_space<vmem>>, %arg3: memref<1x128xf32, #tpu.memory_space<vmem>>, %arg4: memref<128x128xbf16, #tpu.memory_space<vmem>>, %arg5: memref<1x128xf32, #tpu.memory_space<vmem>>, %arg6: memref<128x128xbf16, #tpu.memory_space<vmem>>, %arg7: memref<128x128xf32, #tpu.memory_space<vmem>>, %arg8: memref<128x128xf32, #tpu.memory_space<vmem>>, %arg9: memref<128x128xf32, #tpu.memory_space<vmem>>) attributes {dimension_semantics = [], scalar_prefetch = 0 : i64, scratch_operands = 0 : i64, tpu.core_type = #tpu.core_type<tc>} {
    %c0 = arith.constant 0 : index
    %c0_0 = arith.constant 0 : index
    %0 = vector.load %arg0[%c0, %c0_0] : memref<128x128xbf16, #tpu.memory_space<vmem>>, vector<128x128xbf16>
    %c0_1 = arith.constant 0 : index
    %c0_2 = arith.constant 0 : index
    %1 = vector.load %arg1[%c0_1, %c0_2] : memref<128x8xbf16, #tpu.memory_space<vmem>>, vector<128x8xbf16>
    %c0_3 = arith.constant 0 : index
    %c0_4 = arith.constant 0 : index
    %2 = vector.load %arg2[%c0_3, %c0_4] : memref<8x128xbf16, #tpu.memory_space<vmem>>, vector<8x128xbf16>
    %cst = arith.constant dense<0.000000e+00> : vector<128x128xf32>
    %3 = tpu.matmul %1, %2, %cst {dimension_numbers = #tpu.dot_dimension_numbers<[1], [0], [0], [1], [0, 0, 1, 1], [], []>} : vector<128x8xbf16>, vector<8x128xbf16>, vector<128x128xf32> -> vector<128x128xf32>
    %4 = arith.truncf %3 : vector<128x128xf32> to vector<128x128xbf16>
    %cst_5 = arith.constant dense<0.000000e+00> : vector<128x128xf32>
    %5 = tpu.matmul %0, %4, %cst_5 {dimension_numbers = #tpu.dot_dimension_numbers<[1], [0], [0], [1], [0, 0, 1, 1], [], []>} : vector<128x128xbf16>, vector<128x128xbf16>, vector<128x128xf32> -> vector<128x128xf32>
    %c0_6 = arith.constant 0 : index
    %c0_7 = arith.constant 0 : index
    %6 = vector.load %arg3[%c0_6, %c0_7] : memref<1x128xf32, #tpu.memory_space<vmem>>, vector<1x128xf32>
    %7 = vector.broadcast %6 : vector<1x128xf32> to vector<128x128xf32>
    %8 = arith.addf %5, %7 : vector<128x128xf32>
    %cst_8 = arith.constant 0.000000e+00 : f32
    %9 = vector.broadcast %cst_8 : f32 to vector<128x128xf32>
    %10 = arith.maximumf %8, %9 : vector<128x128xf32>
    %11 = arith.truncf %10 : vector<128x128xf32> to vector<128x128xbf16>
    %c0_9 = arith.constant 0 : index
    %c0_10 = arith.constant 0 : index
    %12 = vector.load %arg4[%c0_9, %c0_10] : memref<128x128xbf16, #tpu.memory_space<vmem>>, vector<128x128xbf16>
    %cst_11 = arith.constant dense<0.000000e+00> : vector<128x128xf32>
    %13 = tpu.matmul %11, %12, %cst_11 {dimension_numbers = #tpu.dot_dimension_numbers<[1], [0], [0], [1], [0, 0, 1, 1], [], []>} : vector<128x128xbf16>, vector<128x128xbf16>, vector<128x128xf32> -> vector<128x128xf32>
    %14 = arith.truncf %13 : vector<128x128xf32> to vector<128x128xbf16>
    %cst_12 = arith.constant dense<0.000000e+00> : vector<128x128xf32>
    %15 = tpu.matmul %0, %14, %cst_12 {dimension_numbers = #tpu.dot_dimension_numbers<[1], [0], [0], [1], [0, 0, 1, 1], [], []>} : vector<128x128xbf16>, vector<128x128xbf16>, vector<128x128xf32> -> vector<128x128xf32>
    %c0_13 = arith.constant 0 : index
    %c0_14 = arith.constant 0 : index
    %16 = vector.load %arg5[%c0_13, %c0_14] : memref<1x128xf32, #tpu.memory_space<vmem>>, vector<1x128xf32>
    %17 = vector.broadcast %16 : vector<1x128xf32> to vector<128x128xf32>
    %18 = arith.addf %15, %17 : vector<128x128xf32>
    %c0_15 = arith.constant 0 : index
    %c0_16 = arith.constant 0 : index
    %19 = vector.load %arg8[%c0_15, %c0_16] : memref<128x128xf32, #tpu.memory_space<vmem>>, vector<128x128xf32>
    tpu.vector_store %arg8[%c0_15, %c0_16], %18 {strides = array<i32>} : memref<128x128xf32, #tpu.memory_space<vmem>>, vector<128x128xf32>,
    %20 = arith.truncf %18 : vector<128x128xf32> to vector<128x128xbf16>
    %c0_17 = arith.constant 0 : index
    %c0_18 = arith.constant 0 : index
    %21 = vector.load %arg6[%c0_17, %c0_18] : memref<128x128xbf16, #tpu.memory_space<vmem>>, vector<128x128xbf16>
    %cst_19 = arith.constant dense<0.000000e+00> : vector<128x128xf32>
    %22 = tpu.matmul %20, %21, %cst_19 {dimension_numbers = #tpu.dot_dimension_numbers<[1], [0], [0], [1], [0, 0, 1, 1], [], []>} : vector<128x128xbf16>, vector<128x128xbf16>, vector<128x128xf32> -> vector<128x128xf32>
    %c0_20 = arith.constant 0 : index
    %c0_21 = arith.constant 0 : index
    %23 = vector.load %arg7[%c0_20, %c0_21] : memref<128x128xf32, #tpu.memory_space<vmem>>, vector<128x128xf32>
    %24 = arith.addf %22, %23 : vector<128x128xf32>
    %cst_22 = arith.constant dense<0xFF800000> : vector<128xf32>
    %25 = vector.multi_reduction <maximumf>, %24, %cst_22 [1] : vector<128x128xf32> to vector<128xf32>
    %26 = vector.shape_cast %25 : vector<128xf32> to vector<128x1xf32>
    %27 = vector.broadcast %26 : vector<128x1xf32> to vector<128x128xf32>
    %28 = arith.subf %24, %27 : vector<128x128xf32>
    %29 = math.exp %28 : vector<128x128xf32>
    %cst_23 = arith.constant dense<0.000000e+00> : vector<128xf32>
    %30 = vector.multi_reduction <add>, %29, %cst_23 [1] : vector<128x128xf32> to vector<128xf32>
    %31 = vector.shape_cast %30 : vector<128xf32> to vector<128x1xf32>
    %32 = math.log %31 : vector<128x1xf32>
    %33 = vector.broadcast %32 : vector<128x1xf32> to vector<128x128xf32>
    %34 = arith.subf %28, %33 : vector<128x128xf32>
    %c0_24 = arith.constant 0 : index
    %c0_25 = arith.constant 0 : index
    %35 = vector.load %arg9[%c0_24, %c0_25] : memref<128x128xf32, #tpu.memory_space<vmem>>, vector<128x128xf32>
    tpu.vector_store %arg9[%c0_24, %c0_25], %34 {strides = array<i32>} : memref<128x128xf32, #tpu.memory_space<vmem>>, vector<128x128xf32>,
    return
  }
}

</mosaic_0001>

<llo_original>
// kernel: gcn_forward.1
$region0: #{gcn_forward.1}
  #allocation0 [shape = 'u32[]', space=smem, size = 0x4, offset = 0x4, fixed_abs, tag = 'smem constant byte address 0x4 - core index']
  #allocation1 [shape = 'u32[144,128]{1,0:T(1,128)}', space=vmem, size = 0x12000, scoped, tag = 'internal scratch']
  %s0 = inlined_call_operand.vmem [shape: bf16[128,128], index: 0, kind: input, shape index: {}]
  %s1 = inlined_call_operand.vmem [shape: bf16[128,8], index: 1, kind: input, shape index: {}]
  %s2 = inlined_call_operand.vmem [shape: bf16[8,128], index: 2, kind: input, shape index: {}]
  %s3 = inlined_call_operand.vmem [shape: f32[1,128], index: 3, kind: input, shape index: {}]
  %s4 = inlined_call_operand.vmem [shape: bf16[128,128], index: 4, kind: input, shape index: {}]
  %s5 = inlined_call_operand.vmem [shape: f32[1,128], index: 5, kind: input, shape index: {}]
  %s6 = inlined_call_operand.vmem [shape: bf16[128,128], index: 6, kind: input, shape index: {}]
  %s7 = inlined_call_operand.vmem [shape: f32[128,128], index: 7, kind: input, shape index: {}]
  %s8 = inlined_call_operand.vmem [shape: f32[128,128], index: 8, kind: output, shape index: {0}]
  %s9 = inlined_call_operand.vmem [shape: f32[128,128], index: 9, kind: output, shape index: {1}]
  %10 = xla_tuple %s8, %s9
  %s11 = sld [smem:[#allocation0]]
  $region50: #{gcn_forward.1} parent=0
    _
  %s13 = ssub.s32 1, %s11
  %s14 = scalar_select 0, %s13, %s11
  // Predicated region
  $region2: #{gcn_forward.1} parent=0 // pred_check
    _
  $region3: #{gcn_forward.1} parent=0 // pred_check_branch
    %16 = sbr.rel (0) target = $region5
  $region4: #{gcn_forward.1} parent=0 // pred_region
    _
  $region5: #{gcn_forward.1} parent=0 // pred_fallthru
    _
  // Predicated region
  $region6: #{gcn_forward.1} parent=0 // pred_check
    _
  $region7: #{gcn_forward.1} parent=0 // pred_check_branch
    %18 = sbr.rel (0) target = $region9
  $region8: #{gcn_forward.1} parent=0 // pred_region
    _
  $region9: #{gcn_forward.1} parent=0 // pred_fallthru
    _
  // Predicated region
  $region10: #{gcn_forward.1} parent=0 // pred_check
    _
  $region11: #{gcn_forward.1} parent=0 // pred_check_branch
    %20 = sbr.rel (0) target = $region13
  $region12: #{gcn_forward.1} parent=0 // pred_region
    _
  $region13: #{gcn_forward.1} parent=0 // pred_fallthru
    _
  // Predicated region
  $region14: #{gcn_forward.1} parent=0 // pred_check
    _
  $region15: #{gcn_forward.1} parent=0 // pred_check_branch
    %22 = sbr.rel (0) target = $region17
  $region16: #{gcn_forward.1} parent=0 // pred_region
    _
  $region17: #{gcn_forward.1} parent=0 // pred_fallthru
    _
  // Predicated region
  $region18: #{gcn_forward.1} parent=0 // pred_check
    _
  $region19: #{gcn_forward.1} parent=0 // pred_check_branch
    %24 = sbr.rel (0) target = $region21
  $region20: #{gcn_forward.1} parent=0 // pred_region
    _
  $region21: #{gcn_forward.1} parent=0 // pred_fallthru
    _
  // Predicated region
  $region22: #{gcn_forward.1} parent=0 // pred_check
    _
  $region23: #{gcn_forward.1} parent=0 // pred_check_branch
    %26 = sbr.rel (0) target = $region25
  $region24: #{gcn_forward.1} parent=0 // pred_region
    _
  $region25: #{gcn_forward.1} parent=0 // pred_fallthru
    _
  // Predicated region
  $region26: #{gcn_forward.1} parent=0 // pred_check
    _
  $region27: #{gcn_forward.1} parent=0 // pred_check_branch
    %28 = sbr.rel (0) target = $region29
  $region28: #{gcn_forward.1} parent=0 // pred_region
    _
  $region29: #{gcn_forward.1} parent=0 // pred_fallthru
    _
  // Predicated region
  $region30: #{gcn_forward.1} parent=0 // pred_check
    _
  $region31: #{gcn_forward.1} parent=0 // pred_check_branch
    %30 = sbr.rel (0) target = $region33
  $region32: #{gcn_forward.1} parent=0 // pred_region
    _
  $region33: #{gcn_forward.1} parent=0 // pred_fallthru
    _
  %v32 = vld [vmem:[%s0] sm:$0xf]
  %v33 = vld [vmem:[%s0 + $0x4] sm:$0xf]
  %v34 = vld [vmem:[%s0 + $0x8] sm:$0xf]
  %v35 = vld [vmem:[%s0 + $0xc] sm:$0xf]
  %v36 = vld [vmem:[%s0 + $0x10] sm:$0xf]
  %v37 = vld [vmem:[%s0 + $0x14] sm:$0xf]
  %v38 = vld [vmem:[%s0 + $0x18] sm:$0xf]
  %v39 = vld [vmem:[%s0 + $0x1c] sm:$0xf]
  %v40 = vld [vmem:[%s0 + $0x20] sm:$0xf]
  %v41 = vld [vmem:[%s0 + $0x24] sm:$0xf]
  %v42 = vld [vmem:[%s0 + $0x28] sm:$0xf]
  %v43 = vld [vmem:[%s0 + $0x2c] sm:$0xf]
  %v44 = vld [vmem:[%s0 + $0x30] sm:$0xf]
  %v45 = vld [vmem:[%s0 + $0x34] sm:$0xf]
  %v46 = vld [vmem:[%s0 + $0x38] sm:$0xf]
  %v47 = vld [vmem:[%s0 + $0x3c] sm:$0xf]
  %v48 = vld [vmem:[%s1] sm:$0xf]
  %v49 = vld [vmem:[%s1 + $0x4] sm:$0xf]
  %v50 = vld [vmem:[%s1 + $0x8] sm:$0xf]
  %v51 = vld [vmem:[%s1 + $0xc] sm:$0xf]
  %v52 = vld [vmem:[%s1 + $0x10] sm:$0xf]
  %v53 = vld [vmem:[%s1 + $0x14] sm:$0xf]
  %v54 = vld [vmem:[%s1 + $0x18] sm:$0xf]
  %v55 = vld [vmem:[%s1 + $0x1c] sm:$0xf]
  %v56 = vld [vmem:[%s1 + $0x20] sm:$0xf]
  %v57 = vld [vmem:[%s1 + $0x24] sm:$0xf]
  %v58 = vld [vmem:[%s1 + $0x28] sm:$0xf]
  %v59 = vld [vmem:[%s1 + $0x2c] sm:$0xf]
  %v60 = vld [vmem:[%s1 + $0x30] sm:$0xf]
  %v61 = vld [vmem:[%s1 + $0x34] sm:$0xf]
  %v62 = vld [vmem:[%s1 + $0x38] sm:$0xf]
  %v63 = vld [vmem:[%s1 + $0x3c] sm:$0xf]
  %v64 = vld [vmem:[%s2] sm:$0xf]
  %v81 = vunpack.c.l.b16 %v48
  %v82 = vunpack.c.l.b16 %v49
  %v83 = vunpack.c.l.b16 %v50
  %v84 = vunpack.c.l.b16 %v51
  %v85 = vunpack.c.l.b16 %v52
  %v86 = vunpack.c.l.b16 %v53
  %v87 = vunpack.c.l.b16 %v54
  %v88 = vunpack.c.l.b16 %v55
  %v89 = vunpack.c.l.b16 %v56
  %v90 = vunpack.c.l.b16 %v57
  %v91 = vunpack.c.l.b16 %v58
  %v92 = vunpack.c.l.b16 %v59
  %v93 = vunpack.c.l.b16 %v60
  %v94 = vunpack.c.l.b16 %v61
  %v95 = vunpack.c.l.b16 %v62
  %v96 = vunpack.c.l.b16 %v63
  %v97 = vpack.c.b16 %v82, %v81
  %v98 = vpack.c.b16 %v84, %v83
  %v99 = vpack.c.b16 %v86, %v85
  %v100 = vpack.c.b16 %v88, %v87
  %v101 = vpack.c.b16 %v90, %v89
  %v102 = vpack.c.b16 %v92, %v91
  %v103 = vpack.c.b16 %v94, %v93
  %v104 = vpack.c.b16 %v96, %v95
  %vm105 = vcmask 64512
  %v107 = vsel %vm105, %v97, 0
  %v110 = vsel %vm105, %v98, 0
  %v113 = vsel %vm105, %v99, 0
  %v116 = vsel %vm105, %v100, 0
  %v119 = vsel %vm105, %v101, 0
  %v122 = vsel %vm105, %v102, 0
  %v125 = vsel %vm105, %v103, 0
  %v128 = vsel %vm105, %v104, 0
  %vm130 = vcmask 1043456
  %v132 = vsel %vm130, %v64, 0
  %134 = vmatprep.subr.bf16.mxu0 0
  %135 = vmatpush1.bf16.msra.mxu0 0
  %136 = vmatprep.subr.bf16.mxu0 0
  %137 = vmatpush1.bf16.msra.mxu0 0
  %138 = vmatprep.subr.bf16.mxu0 0
  %139 = vmatpush1.bf16.msra.mxu0 0
  %140 = vmatprep.subr.bf16.mxu0 0
  %141 = vmatpush1.bf16.msra.mxu0 0
  %142 = vmatprep.subr.bf16.mxu0 0
  %143 = vmatpush1.bf16.msra.mxu0 0
  %144 = vmatprep.subr.bf16.mxu0 0
  %145 = vmatpush1.bf16.msra.mxu0 0
  %146 = vmatprep.subr.bf16.mxu0 0
  %147 = vmatpush1.bf16.msra.mxu0 0
  %148 = vmatprep.subr.bf16.mxu0 0
  %149 = vmatpush1.bf16.msra.mxu0 %v132
  %150 = vmatprep.subr.bf16.mxu0 0
  %151 = vmatpush2.bf16.msra.mxu0 0
  %152 = vmatprep.subr.bf16.mxu0 0
  %153 = vmatpush2.bf16.msra.mxu0 0
  %154 = vmatprep.subr.bf16.mxu0 0
  %155 = vmatpush2.bf16.msra.mxu0 0
  %156 = vmatprep.subr.bf16.mxu0 0
  %157 = vmatpush2.bf16.msra.mxu0 0
  %158 = vmatprep.subr.bf16.mxu0 0
  %159 = vmatpush2.bf16.msra.mxu0 0
  %160 = vmatprep.subr.bf16.mxu0 0
  %161 = vmatpush2.bf16.msra.mxu0 0
  %162 = vmatprep.subr.bf16.mxu0 0
  %163 = vmatpush2.bf16.msra.mxu0 0
  %164 = vmatprep.subr.bf16.mxu0 0
  %165 = vmatpush2.bf16.msra.mxu0 0
  %166 = vmatprep.mubr.bf16.mxu0 0
  %167 = vmatmul.mubr.bf16.gmra.mxu0 %v107
  %v168 = vpop.f32.mrf.mxu0
  %v169 = vadd.f32 0.0, %v168
  %v170 = vpop.f32.mrf.mxu0
  %v171 = vpop.f32.mrf.mxu0
  %v172 = vadd.f32 0.0, %v171
  %v173 = vpop.f32.mrf.mxu0
  %174 = vmatprep.mubr.bf16.mxu0 0
  %175 = vmatmul.mubr.bf16.gmra.mxu0 %v110
  %v176 = vpop.f32.mrf.mxu0
  %v177 = vadd.f32 0.0, %v176
  %v178 = vpop.f32.mrf.mxu0
  %v179 = vpop.f32.mrf.mxu0
  %v180 = vadd.f32 0.0, %v179
  %v181 = vpop.f32.mrf.mxu0
  %182 = vmatprep.mubr.bf16.mxu0 0
  %183 = vmatmul.mubr.bf16.gmra.mxu0 %v113
  %v184 = vpop.f32.mrf.mxu0
  %v185 = vadd.f32 0.0, %v184
  %v186 = vpop.f32.mrf.mxu0
  %v187 = vpop.f32.mrf.mxu0
  %v188 = vadd.f32 0.0, %v187
  %v189 = vpop.f32.mrf.mxu0
  %190 = vmatprep.mubr.bf16.mxu0 0
  %191 = vmatmul.mubr.bf16.gmra.mxu0 %v116
  %v192 = vpop.f32.mrf.mxu0
  %v193 = vadd.f32 0.0, %v192
  %v194 = vpop.f32.mrf.mxu0
  %v195 = vpop.f32.mrf.mxu0
  %v196 = vadd.f32 0.0, %v195
  %v197 = vpop.f32.mrf.mxu0
  %198 = vmatprep.mubr.bf16.mxu0 0
  %199 = vmatmul.mubr.bf16.gmra.mxu0 %v119
  %v200 = vpop.f32.mrf.mxu0
  %v201 = vadd.f32 0.0, %v200
  %v202 = vpop.f32.mrf.mxu0
  %v203 = vpop.f32.mrf.mxu0
  %v204 = vadd.f32 0.0, %v203
  %v205 = vpop.f32.mrf.mxu0
  %206 = vmatprep.mubr.bf16.mxu0 0
  %207 = vmatmul.mubr.bf16.gmra.mxu0 %v122
  %v208 = vpop.f32.mrf.mxu0
  %v209 = vadd.f32 0.0, %v208
  %v210 = vpop.f32.mrf.mxu0
  %v211 = vpop.f32.mrf.mxu0
  %v212 = vadd.f32 0.0, %v211
  %v213 = vpop.f32.mrf.mxu0
  %214 = vmatprep.mubr.bf16.mxu0 0
  %215 = vmatmul.mubr.bf16.gmra.mxu0 %v125
  %v216 = vpop.f32.mrf.mxu0
  %v217 = vadd.f32 0.0, %v216
  %v218 = vpop.f32.mrf.mxu0
  %v219 = vpop.f32.mrf.mxu0
  %v220 = vadd.f32 0.0, %v219
  %v221 = vpop.f32.mrf.mxu0
  %222 = vmatprep.mubr.bf16.mxu0 0
  %223 = vmatmul.mubr.bf16.gmra.mxu0 %v128
  %v224 = vpop.f32.mrf.mxu0
  %v225 = vadd.f32 0.0, %v224
  %v226 = vpop.f32.mrf.mxu0
  %v227 = vpop.f32.mrf.mxu0
  %v228 = vadd.f32 0.0, %v227
  %v229 = vpop.f32.mrf.mxu0
  %230 = vdwg.mxu0
  %v231 = vpack.c.bf16 %v172, %v169
  %v232 = vpack.c.bf16 %v180, %v177
  %v233 = vpack.c.bf16 %v188, %v185
  %v234 = vpack.c.bf16 %v196, %v193
  %v235 = vpack.c.bf16 %v204, %v201
  %v236 = vpack.c.bf16 %v212, %v209
  %v237 = vpack.c.bf16 %v220, %v217
  %v238 = vpack.c.bf16 %v228, %v225
  %v239 = vld [vmem:[%s3] sm:$0x1]
  %v241 = vlaneseq
  %v242 = vshrl.u32 %v241, 7
  %v243 = vsub.s32 0, %v242
  %v244 = vrot.slane %v239, %v243
  %v262 = vunpack.c.l.b16 %v32
  %v263 = vunpack.c.l.b16 %v33
  %v264 = vunpack.c.l.b16 %v34
  %v265 = vunpack.c.l.b16 %v35
  %v266 = vunpack.c.l.b16 %v36
  %v267 = vunpack.c.l.b16 %v37
  %v268 = vunpack.c.l.b16 %v38
  %v269 = vunpack.c.l.b16 %v39
  %v270 = vunpack.c.l.b16 %v40
  %v271 = vunpack.c.l.b16 %v41
  %v272 = vunpack.c.l.b16 %v42
  %v273 = vunpack.c.l.b16 %v43
  %v274 = vunpack.c.l.b16 %v44
  %v275 = vunpack.c.l.b16 %v45
  %v276 = vunpack.c.l.b16 %v46
  %v277 = vunpack.c.l.b16 %v47
  %v278 = vpack.c.b16 %v263, %v262
  %v279 = vpack.c.b16 %v265, %v264
  %v280 = vpack.c.b16 %v267, %v266
  %v281 = vpack.c.b16 %v269, %v268
  %v282 = vpack.c.b16 %v271, %v270
  %v283 = vpack.c.b16 %v273, %v272
  %v284 = vpack.c.b16 %v275, %v274
  %v285 = vpack.c.b16 %v277, %v276
  %294 = vmatprep.subr.bf16.mxu0 0
  %295 = vmatpush1.bf16.msra.mxu0 %v238
  %296 = vmatprep.subr.bf16.mxu0 0
  %297 = vmatpush1.bf16.msra.mxu0 %v237
  %298 = vmatprep.subr.bf16.mxu0 0
  %299 = vmatpush1.bf16.msra.mxu0 %v236
  %300 = vmatprep.subr.bf16.mxu0 0
  %301 = vmatpush1.bf16.msra.mxu0 %v235
  %302 = vmatprep.subr.bf16.mxu0 0
  %303 = vmatpush1.bf16.msra.mxu0 %v234
  %304 = vmatprep.subr.bf16.mxu0 0
  %305 = vmatpush1.bf16.msra.mxu0 %v233
  %306 = vmatprep.subr.bf16.mxu0 0
  %307 = vmatpush1.bf16.msra.mxu0 %v232
  %308 = vmatprep.subr.bf16.mxu0 0
  %309 = vmatpush1.bf16.msra.mxu0 %v231
  %310 = vmatprep.subr.bf16.mxu0 0
  %311 = vmatpush2.bf16.msra.mxu0 0
  %312 = vmatprep.subr.bf16.mxu0 0
  %313 = vmatpush2.bf16.msra.mxu0 0
  %314 = vmatprep.subr.bf16.mxu0 0
  %315 = vmatpush2.bf16.msra.mxu0 0
  %316 = vmatprep.subr.bf16.mxu0 0
  %317 = vmatpush2.bf16.msra.mxu0 0
  %318 = vmatprep.subr.bf16.mxu0 0
  %319 = vmatpush2.bf16.msra.mxu0 0
  %320 = vmatprep.subr.bf16.mxu0 0
  %321 = vmatpush2.bf16.msra.mxu0 0
  %322 = vmatprep.subr.bf16.mxu0 0
  %323 = vmatpush2.bf16.msra.mxu0 0
  %324 = vmatprep.subr.bf16.mxu0 0
  %325 = vmatpush2.bf16.msra.mxu0 0
  %326 = vmatprep.mubr.bf16.mxu0 0
  %327 = vmatmul.mubr.bf16.gmra.mxu0 %v278
  %v328 = vpop.f32.mrf.mxu0
  %v329 = vadd.f32 %v244, %v328
  %v330 = vpop.f32.mrf.mxu0
  %v331 = vpop.f32.mrf.mxu0
  %v332 = vadd.f32 %v244, %v331
  %v333 = vpop.f32.mrf.mxu0
  %334 = vmatprep.mubr.bf16.mxu0 0
  %335 = vmatmul.mubr.bf16.gmra.mxu0 %v279
  %v336 = vpop.f32.mrf.mxu0
  %v337 = vadd.f32 %v244, %v336
  %v338 = vpop.f32.mrf.mxu0
  %v339 = vpop.f32.mrf.mxu0
  %v340 = vadd.f32 %v244, %v339
  %v341 = vpop.f32.mrf.mxu0
  %342 = vmatprep.mubr.bf16.mxu0 0
  %343 = vmatmul.mubr.bf16.gmra.mxu0 %v280
  %v344 = vpop.f32.mrf.mxu0
  %v345 = vadd.f32 %v244, %v344
  %v346 = vpop.f32.mrf.mxu0
  %v347 = vpop.f32.mrf.mxu0
  %v348 = vadd.f32 %v244, %v347
  %v349 = vpop.f32.mrf.mxu0
  %350 = vmatprep.mubr.bf16.mxu0 0
  %351 = vmatmul.mubr.bf16.gmra.mxu0 %v281
  %v352 = vpop.f32.mrf.mxu0
  %v353 = vadd.f32 %v244, %v352
  %v354 = vpop.f32.mrf.mxu0
  %v355 = vpop.f32.mrf.mxu0
  %v356 = vadd.f32 %v244, %v355
  %v357 = vpop.f32.mrf.mxu0
  %358 = vmatprep.mubr.bf16.mxu0 0
  %359 = vmatmul.mubr.bf16.gmra.mxu0 %v282
  %v360 = vpop.f32.mrf.mxu0
  %v361 = vadd.f32 %v244, %v360
  %v362 = vpop.f32.mrf.mxu0
  %v363 = vpop.f32.mrf.mxu0
  %v364 = vadd.f32 %v244, %v363
  %v365 = vpop.f32.mrf.mxu0
  %366 = vmatprep.mubr.bf16.mxu0 0
  %367 = vmatmul.mubr.bf16.gmra.mxu0 %v283
  %v368 = vpop.f32.mrf.mxu0
  %v369 = vadd.f32 %v244, %v368
  %v370 = vpop.f32.mrf.mxu0
  %v371 = vpop.f32.mrf.mxu0
  %v372 = vadd.f32 %v244, %v371
  %v373 = vpop.f32.mrf.mxu0
  %374 = vmatprep.mubr.bf16.mxu0 0
  %375 = vmatmul.mubr.bf16.gmra.mxu0 %v284
  %v376 = vpop.f32.mrf.mxu0
  %v377 = vadd.f32 %v244, %v376
  %v378 = vpop.f32.mrf.mxu0
  %v379 = vpop.f32.mrf.mxu0
  %v380 = vadd.f32 %v244, %v379
  %v381 = vpop.f32.mrf.mxu0
  %382 = vmatprep.mubr.bf16.mxu0 0
  %383 = vmatmul.mubr.bf16.gmra.mxu0 %v285
  %v384 = vpop.f32.mrf.mxu0
  %v385 = vadd.f32 %v244, %v384
  %v386 = vpop.f32.mrf.mxu0
  %v387 = vpop.f32.mrf.mxu0
  %v388 = vadd.f32 %v244, %v387
  %v389 = vpop.f32.mrf.mxu0
  %390 = vdwg.mxu0
  %v391 = vmax.f32 %v329, 0.0
  %v392 = vmax.f32 %v332, 0.0
  %v393 = vmax.f32 %v337, 0.0
  %v394 = vmax.f32 %v340, 0.0
  %v395 = vmax.f32 %v345, 0.0
  %v396 = vmax.f32 %v348, 0.0
  %v397 = vmax.f32 %v353, 0.0
  %v398 = vmax.f32 %v356, 0.0
  %v399 = vmax.f32 %v361, 0.0
  %v400 = vmax.f32 %v364, 0.0
  %v401 = vmax.f32 %v369, 0.0
  %v402 = vmax.f32 %v372, 0.0
  %v403 = vmax.f32 %v377, 0.0
  %v404 = vmax.f32 %v380, 0.0
  %v405 = vmax.f32 %v385, 0.0
  %v406 = vmax.f32 %v388, 0.0
  %v407 = vpack.c.bf16 %v392, %v391
  %v408 = vpack.c.bf16 %v394, %v393
  %v409 = vpack.c.bf16 %v396, %v395
  %v410 = vpack.c.bf16 %v398, %v397
  %v411 = vpack.c.bf16 %v400, %v399
  %v412 = vpack.c.bf16 %v402, %v401
  %v413 = vpack.c.bf16 %v404, %v403
  %v414 = vpack.c.bf16 %v406, %v405
  %v415 = vld [vmem:[%s4] sm:$0xf]
  %v416 = vld [vmem:[%s4 + $0x4] sm:$0xf]
  %v417 = vld [vmem:[%s4 + $0x8] sm:$0xf]
  %v418 = vld [vmem:[%s4 + $0xc] sm:$0xf]
  %v419 = vld [vmem:[%s4 + $0x10] sm:$0xf]
  %v420 = vld [vmem:[%s4 + $0x14] sm:$0xf]
  %v421 = vld [vmem:[%s4 + $0x18] sm:$0xf]
  %v422 = vld [vmem:[%s4 + $0x1c] sm:$0xf]
  %v423 = vld [vmem:[%s4 + $0x20] sm:$0xf]
  %v424 = vld [vmem:[%s4 + $0x24] sm:$0xf]
  %v425 = vld [vmem:[%s4 + $0x28] sm:$0xf]
  %v426 = vld [vmem:[%s4 + $0x2c] sm:$0xf]
  %v427 = vld [vmem:[%s4 + $0x30] sm:$0xf]
  %v428 = vld [vmem:[%s4 + $0x34] sm:$0xf]
  %v429 = vld [vmem:[%s4 + $0x38] sm:$0xf]
  %v430 = vld [vmem:[%s4 + $0x3c] sm:$0xf]
  %v447 = vunpack.c.l.b16 %v415
  %v448 = vunpack.c.l.b16 %v416
  %v449 = vunpack.c.l.b16 %v417
  %v450 = vunpack.c.l.b16 %v418
  %v451 = vunpack.c.l.b16 %v419
  %v452 = vunpack.c.l.b16 %v420
  %v453 = vunpack.c.l.b16 %v421
  %v454 = vunpack.c.l.b16 %v422
  %v455 = vunpack.c.l.b16 %v423
  %v456 = vunpack.c.l.b16 %v424
  %v457 = vunpack.c.l.b16 %v425
  %v458 = vunpack.c.l.b16 %v426
  %v459 = vunpack.c.l.b16 %v427
  %v460 = vunpack.c.l.b16 %v428
  %v461 = vunpack.c.l.b16 %v429
  %v462 = vunpack.c.l.b16 %v430
  %v463 = vpack.c.b16 %v448, %v447
  %v464 = vpack.c.b16 %v450, %v449
  %v465 = vpack.c.b16 %v452, %v451
  %v466 = vpack.c.b16 %v454, %v453
  %v467 = vpack.c.b16 %v456, %v455
  %v468 = vpack.c.b16 %v458, %v457
  %v469 = vpack.c.b16 %v460, %v459
  %v470 = vpack.c.b16 %v462, %v461
  %479 = vmatprep.subr.bf16.mxu0 0
  %480 = vmatpush1.bf16.msra.mxu0 %v470
  %481 = vmatprep.subr.bf16.mxu0 0
  %482 = vmatpush1.bf16.msra.mxu0 %v469
  %483 = vmatprep.subr.bf16.mxu0 0
  %484 = vmatpush1.bf16.msra.mxu0 %v468
  %485 = vmatprep.subr.bf16.mxu0 0
  %486 = vmatpush1.bf16.msra.mxu0 %v467
  %487 = vmatprep.subr.bf16.mxu0 0
  %488 = vmatpush1.bf16.msra.mxu0 %v466
  %489 = vmatprep.subr.bf16.mxu0 0
  %490 = vmatpush1.bf16.msra.mxu0 %v465
  %491 = vmatprep.subr.bf16.mxu0 0
  %492 = vmatpush1.bf16.msra.mxu0 %v464
  %493 = vmatprep.subr.bf16.mxu0 0
  %494 = vmatpush1.bf16.msra.mxu0 %v463
  %495 = vmatprep.subr.bf16.mxu0 0
  %496 = vmatpush2.bf16.msra.mxu0 0
  %497 = vmatprep.subr.bf16.mxu0 0
  %498 = vmatpush2.bf16.msra.mxu0 0
  %499 = vmatprep.subr.bf16.mxu0 0
  %500 = vmatpush2.bf16.msra.mxu0 0
  %501 = vmatprep.subr.bf16.mxu0 0
  %502 = vmatpush2.bf16.msra.mxu0 0
  %503 = vmatprep.subr.bf16.mxu0 0
  %504 = vmatpush2.bf16.msra.mxu0 0
  %505 = vmatprep.subr.bf16.mxu0 0
  %506 = vmatpush2.bf16.msra.mxu0 0
  %507 = vmatprep.subr.bf16.mxu0 0
  %508 = vmatpush2.bf16.msra.mxu0 0
  %509 = vmatprep.subr.bf16.mxu0 0
  %510 = vmatpush2.bf16.msra.mxu0 0
  %511 = vmatprep.mubr.bf16.mxu0 0
  %512 = vmatmul.mubr.bf16.gmra.mxu0 %v407
  %v513 = vpop.f32.mrf.mxu0
  %v514 = vadd.f32 0.0, %v513
  %v515 = vpop.f32.mrf.mxu0
  %v516 = vpop.f32.mrf.mxu0
  %v517 = vadd.f32 0.0, %v516
  %v518 = vpop.f32.mrf.mxu0
  %519 = vmatprep.mubr.bf16.mxu0 0
  %520 = vmatmul.mubr.bf16.gmra.mxu0 %v408
  %v521 = vpop.f32.mrf.mxu0
  %v522 = vadd.f32 0.0, %v521
  %v523 = vpop.f32.mrf.mxu0
  %v524 = vpop.f32.mrf.mxu0
  %v525 = vadd.f32 0.0, %v524
  %v526 = vpop.f32.mrf.mxu0
  %527 = vmatprep.mubr.bf16.mxu0 0
  %528 = vmatmul.mubr.bf16.gmra.mxu0 %v409
  %v529 = vpop.f32.mrf.mxu0
  %v530 = vadd.f32 0.0, %v529
  %v531 = vpop.f32.mrf.mxu0
  %v532 = vpop.f32.mrf.mxu0
  %v533 = vadd.f32 0.0, %v532
  %v534 = vpop.f32.mrf.mxu0
  %535 = vmatprep.mubr.bf16.mxu0 0
  %536 = vmatmul.mubr.bf16.gmra.mxu0 %v410
  %v537 = vpop.f32.mrf.mxu0
  %v538 = vadd.f32 0.0, %v537
  %v539 = vpop.f32.mrf.mxu0
  %v540 = vpop.f32.mrf.mxu0
  %v541 = vadd.f32 0.0, %v540
  %v542 = vpop.f32.mrf.mxu0
  %543 = vmatprep.mubr.bf16.mxu0 0
  %544 = vmatmul.mubr.bf16.gmra.mxu0 %v411
  %v545 = vpop.f32.mrf.mxu0
  %v546 = vadd.f32 0.0, %v545
  %v547 = vpop.f32.mrf.mxu0
  %v548 = vpop.f32.mrf.mxu0
  %v549 = vadd.f32 0.0, %v548
  %v550 = vpop.f32.mrf.mxu0
  %551 = vmatprep.mubr.bf16.mxu0 0
  %552 = vmatmul.mubr.bf16.gmra.mxu0 %v412
  %v553 = vpop.f32.mrf.mxu0
  %v554 = vadd.f32 0.0, %v553
  %v555 = vpop.f32.mrf.mxu0
  %v556 = vpop.f32.mrf.mxu0
  %v557 = vadd.f32 0.0, %v556
  %v558 = vpop.f32.mrf.mxu0
  %559 = vmatprep.mubr.bf16.mxu0 0
  %560 = vmatmul.mubr.bf16.gmra.mxu0 %v413
  %v561 = vpop.f32.mrf.mxu0
  %v562 = vadd.f32 0.0, %v561
  %v563 = vpop.f32.mrf.mxu0
  %v564 = vpop.f32.mrf.mxu0
  %v565 = vadd.f32 0.0, %v564
  %v566 = vpop.f32.mrf.mxu0
  %567 = vmatprep.mubr.bf16.mxu0 0
  %568 = vmatmul.mubr.bf16.gmra.mxu0 %v414
  %v569 = vpop.f32.mrf.mxu0
  %v570 = vadd.f32 0.0, %v569
  %v571 = vpop.f32.mrf.mxu0
  %v572 = vpop.f32.mrf.mxu0
  %v573 = vadd.f32 0.0, %v572
  %v574 = vpop.f32.mrf.mxu0
  %575 = vdwg.mxu0
  %v576 = vpack.c.bf16 %v517, %v514
  %v577 = vpack.c.bf16 %v525, %v522
  %v578 = vpack.c.bf16 %v533, %v530
  %v579 = vpack.c.bf16 %v541, %v538
  %v580 = vpack.c.bf16 %v549, %v546
  %v581 = vpack.c.bf16 %v557, %v554
  %v582 = vpack.c.bf16 %v565, %v562
  %v583 = vpack.c.bf16 %v573, %v570
  %v584 = vld [vmem:[%s5] sm:$0x1]
  %v586 = vlaneseq
  %v587 = vshrl.u32 %v586, 7
  %v588 = vsub.s32 0, %v587
  %v589 = vrot.slane %v584, %v588
  %591 = vmatprep.subr.bf16.mxu0 0
  %592 = vmatpush1.bf16.msra.mxu0 %v583
  %593 = vmatprep.subr.bf16.mxu0 0
  %594 = vmatpush1.bf16.msra.mxu0 %v582
  %595 = vmatprep.subr.bf16.mxu0 0
  %596 = vmatpush1.bf16.msra.mxu0 %v581
  %597 = vmatprep.subr.bf16.mxu0 0
  %598 = vmatpush1.bf16.msra.mxu0 %v580
  %599 = vmatprep.subr.bf16.mxu0 0
  %600 = vmatpush1.bf16.msra.mxu0 %v579
  %601 = vmatprep.subr.bf16.mxu0 0
  %602 = vmatpush1.bf16.msra.mxu0 %v578
  %603 = vmatprep.subr.bf16.mxu0 0
  %604 = vmatpush1.bf16.msra.mxu0 %v577
  %605 = vmatprep.subr.bf16.mxu0 0
  %606 = vmatpush1.bf16.msra.mxu0 %v576
  %607 = vmatprep.subr.bf16.mxu0 0
  %608 = vmatpush2.bf16.msra.mxu0 0
  %609 = vmatprep.subr.bf16.mxu0 0
  %610 = vmatpush2.bf16.msra.mxu0 0
  %611 = vmatprep.subr.bf16.mxu0 0
  %612 = vmatpush2.bf16.msra.mxu0 0
  %613 = vmatprep.subr.bf16.mxu0 0
  %614 = vmatpush2.bf16.msra.mxu0 0
  %615 = vmatprep.subr.bf16.mxu0 0
  %616 = vmatpush2.bf16.msra.mxu0 0
  %617 = vmatprep.subr.bf16.mxu0 0
  %618 = vmatpush2.bf16.msra.mxu0 0
  %619 = vmatprep.subr.bf16.mxu0 0
  %620 = vmatpush2.bf16.msra.mxu0 0
  %621 = vmatprep.subr.bf16.mxu0 0
  %622 = vmatpush2.bf16.msra.mxu0 0
  %623 = vmatprep.mubr.bf16.mxu0 0
  %624 = vmatmul.mubr.bf16.gmra.mxu0 %v278
  %v625 = vpop.f32.mrf.mxu0
  %v626 = vadd.f32 %v589, %v625
  %v627 = vpop.f32.mrf.mxu0
  %v628 = vpop.f32.mrf.mxu0
  %v629 = vadd.f32 %v589, %v628
  %v630 = vpop.f32.mrf.mxu0
  %631 = vmatprep.mubr.bf16.mxu0 0
  %632 = vmatmul.mubr.bf16.gmra.mxu0 %v279
  %v633 = vpop.f32.mrf.mxu0
  %v634 = vadd.f32 %v589, %v633
  %v635 = vpop.f32.mrf.mxu0
  %v636 = vpop.f32.mrf.mxu0
  %v637 = vadd.f32 %v589, %v636
  %v638 = vpop.f32.mrf.mxu0
  %639 = vmatprep.mubr.bf16.mxu0 0
  %640 = vmatmul.mubr.bf16.gmra.mxu0 %v280
  %v641 = vpop.f32.mrf.mxu0
  %v642 = vadd.f32 %v589, %v641
  %v643 = vpop.f32.mrf.mxu0
  %v644 = vpop.f32.mrf.mxu0
  %v645 = vadd.f32 %v589, %v644
  %v646 = vpop.f32.mrf.mxu0
  %647 = vmatprep.mubr.bf16.mxu0 0
  %648 = vmatmul.mubr.bf16.gmra.mxu0 %v281
  %v649 = vpop.f32.mrf.mxu0
  %v650 = vadd.f32 %v589, %v649
  %v651 = vpop.f32.mrf.mxu0
  %v652 = vpop.f32.mrf.mxu0
  %v653 = vadd.f32 %v589, %v652
  %v654 = vpop.f32.mrf.mxu0
  %655 = vmatprep.mubr.bf16.mxu0 0
  %656 = vmatmul.mubr.bf16.gmra.mxu0 %v282
  %v657 = vpop.f32.mrf.mxu0
  %v658 = vadd.f32 %v589, %v657
  %v659 = vpop.f32.mrf.mxu0
  %v660 = vpop.f32.mrf.mxu0
  %v661 = vadd.f32 %v589, %v660
  %v662 = vpop.f32.mrf.mxu0
  %663 = vmatprep.mubr.bf16.mxu0 0
  %664 = vmatmul.mubr.bf16.gmra.mxu0 %v283
  %v665 = vpop.f32.mrf.mxu0
  %v666 = vadd.f32 %v589, %v665
  %v667 = vpop.f32.mrf.mxu0
  %v668 = vpop.f32.mrf.mxu0
  %v669 = vadd.f32 %v589, %v668
  %v670 = vpop.f32.mrf.mxu0
  %671 = vmatprep.mubr.bf16.mxu0 0
  %672 = vmatmul.mubr.bf16.gmra.mxu0 %v284
  %v673 = vpop.f32.mrf.mxu0
  %v674 = vadd.f32 %v589, %v673
  %v675 = vpop.f32.mrf.mxu0
  %v676 = vpop.f32.mrf.mxu0
  %v677 = vadd.f32 %v589, %v676
  %v678 = vpop.f32.mrf.mxu0
  %679 = vmatprep.mubr.bf16.mxu0 0
  %680 = vmatmul.mubr.bf16.gmra.mxu0 %v285
  %v681 = vpop.f32.mrf.mxu0
  %v682 = vadd.f32 %v589, %v681
  %v683 = vpop.f32.mrf.mxu0
  %v684 = vpop.f32.mrf.mxu0
  %v685 = vadd.f32 %v589, %v684
  %v686 = vpop.f32.mrf.mxu0
  %687 = vdwg.mxu0
  %688 = vst [vmem:[%s8] sm:$0xff] %v626
  %689 = vst [vmem:[%s8 + $0x8] sm:$0xff] %v629
  %690 = vst [vmem:[%s8 + $0x10] sm:$0xff] %v634
  %691 = vst [vmem:[%s8 + $0x18] sm:$0xff] %v637
  %692 = vst [vmem:[%s8 + $0x20] sm:$0xff] %v642
  %693 = vst [vmem:[%s8 + $0x28] sm:$0xff] %v645
  %694 = vst [vmem:[%s8 + $0x30] sm:$0xff] %v650
  %695 = vst [vmem:[%s8 + $0x38] sm:$0xff] %v653
  %696 = vst [vmem:[%s8 + $0x40] sm:$0xff] %v658
  %697 = vst [vmem:[%s8 + $0x48] sm:$0xff] %v661
  %698 = vst [vmem:[%s8 + $0x50] sm:$0xff] %v666
  %699 = vst [vmem:[%s8 + $0x58] sm:$0xff] %v669
  %700 = vst [vmem:[%s8 + $0x60] sm:$0xff] %v674
  %701 = vst [vmem:[%s8 + $0x68] sm:$0xff] %v677
  %702 = vst [vmem:[%s8 + $0x70] sm:$0xff] %v682
  %703 = vst [vmem:[%s8 + $0x78] sm:$0xff] %v685
  %v704 = vpack.c.bf16 %v629, %v626
  %v705 = vpack.c.bf16 %v637, %v634
  %v706 = vpack.c.bf16 %v645, %v642
  %v707 = vpack.c.bf16 %v653, %v650
  %v708 = vpack.c.bf16 %v661, %v658
  %v709 = vpack.c.bf16 %v669, %v666
  %v710 = vpack.c.bf16 %v677, %v674
  %v711 = vpack.c.bf16 %v685, %v682
  %v712 = vld [vmem:[%s6] sm:$0xf]
  %v713 = vld [vmem:[%s6 + $0x4] sm:$0xf]
  %v714 = vld [vmem:[%s6 + $0x8] sm:$0xf]
  %v715 = vld [vmem:[%s6 + $0xc] sm:$0xf]
  %v716 = vld [vmem:[%s6 + $0x10] sm:$0xf]
  %v717 = vld [vmem:[%s6 + $0x14] sm:$0xf]
  %v718 = vld [vmem:[%s6 + $0x18] sm:$0xf]
  %v719 = vld [vmem:[%s6 + $0x1c] sm:$0xf]
  %v720 = vld [vmem:[%s6 + $0x20] sm:$0xf]
  %v721 = vld [vmem:[%s6 + $0x24] sm:$0xf]
  %v722 = vld [vmem:[%s6 + $0x28] sm:$0xf]
  %v723 = vld [vmem:[%s6 + $0x2c] sm:$0xf]
  %v724 = vld [vmem:[%s6 + $0x30] sm:$0xf]
  %v725 = vld [vmem:[%s6 + $0x34] sm:$0xf]
  %v726 = vld [vmem:[%s6 + $0x38] sm:$0xf]
  %v727 = vld [vmem:[%s6 + $0x3c] sm:$0xf]
  %v728 = vld [vmem:[%s7] sm:$0xff]
  %v729 = vld [vmem:[%s7 + $0x8] sm:$0xff]
  %v730 = vld [vmem:[%s7 + $0x10] sm:$0xff]
  %v731 = vld [vmem:[%s7 + $0x18] sm:$0xff]
  %v732 = vld [vmem:[%s7 + $0x20] sm:$0xff]
  %v733 = vld [vmem:[%s7 + $0x28] sm:$0xff]
  %v734 = vld [vmem:[%s7 + $0x30] sm:$0xff]
  %v735 = vld [vmem:[%s7 + $0x38] sm:$0xff]
  %v736 = vld [vmem:[%s7 + $0x40] sm:$0xff]
  %v737 = vld [vmem:[%s7 + $0x48] sm:$0xff]
  %v738 = vld [vmem:[%s7 + $0x50] sm:$0xff]
  %v739 = vld [vmem:[%s7 + $0x58] sm:$0xff]
  %v740 = vld [vmem:[%s7 + $0x60] sm:$0xff]
  %v741 = vld [vmem:[%s7 + $0x68] sm:$0xff]
  %v742 = vld [vmem:[%s7 + $0x70] sm:$0xff]
  %v743 = vld [vmem:[%s7 + $0x78] sm:$0xff]
  %v760 = vunpack.c.l.b16 %v712
  %v761 = vunpack.c.l.b16 %v713
  %v762 = vunpack.c.l.b16 %v714
  %v763 = vunpack.c.l.b16 %v715
  %v764 = vunpack.c.l.b16 %v716
  %v765 = vunpack.c.l.b16 %v717
  %v766 = vunpack.c.l.b16 %v718
  %v767 = vunpack.c.l.b16 %v719
  %v768 = vunpack.c.l.b16 %v720
  %v769 = vunpack.c.l.b16 %v721
  %v770 = vunpack.c.l.b16 %v722
  %v771 = vunpack.c.l.b16 %v723
  %v772 = vunpack.c.l.b16 %v724
  %v773 = vunpack.c.l.b16 %v725
  %v774 = vunpack.c.l.b16 %v726
  %v775 = vunpack.c.l.b16 %v727
  %v776 = vpack.c.b16 %v761, %v760
  %v777 = vpack.c.b16 %v763, %v762
  %v778 = vpack.c.b16 %v765, %v764
  %v779 = vpack.c.b16 %v767, %v766
  %v780 = vpack.c.b16 %v769, %v768
  %v781 = vpack.c.b16 %v771, %v770
  %v782 = vpack.c.b16 %v773, %v772
  %v783 = vpack.c.b16 %v775, %v774
  %792 = vmatprep.subr.bf16.mxu0 0
  %793 = vmatpush1.bf16.msra.mxu0 %v783
  %794 = vmatprep.subr.bf16.mxu0 0
  %795 = vmatpush1.bf16.msra.mxu0 %v782
  %796 = vmatprep.subr.bf16.mxu0 0
  %797 = vmatpush1.bf16.msra.mxu0 %v781
  %798 = vmatprep.subr.bf16.mxu0 0
  %799 = vmatpush1.bf16.msra.mxu0 %v780
  %800 = vmatprep.subr.bf16.mxu0 0
  %801 = vmatpush1.bf16.msra.mxu0 %v779
  %802 = vmatprep.subr.bf16.mxu0 0
  %803 = vmatpush1.bf16.msra.mxu0 %v778
  %804 = vmatprep.subr.bf16.mxu0 0
  %805 = vmatpush1.bf16.msra.mxu0 %v777
  %806 = vmatprep.subr.bf16.mxu0 0
  %807 = vmatpush1.bf16.msra.mxu0 %v776
  %808 = vmatprep.subr.bf16.mxu0 0
  %809 = vmatpush2.bf16.msra.mxu0 0
  %810 = vmatprep.subr.bf16.mxu0 0
  %811 = vmatpush2.bf16.msra.mxu0 0
  %812 = vmatprep.subr.bf16.mxu0 0
  %813 = vmatpush2.bf16.msra.mxu0 0
  %814 = vmatprep.subr.bf16.mxu0 0
  %815 = vmatpush2.bf16.msra.mxu0 0
  %816 = vmatprep.subr.bf16.mxu0 0
  %817 = vmatpush2.bf16.msra.mxu0 0
  %818 = vmatprep.subr.bf16.mxu0 0
  %819 = vmatpush2.bf16.msra.mxu0 0
  %820 = vmatprep.subr.bf16.mxu0 0
  %821 = vmatpush2.bf16.msra.mxu0 0
  %822 = vmatprep.subr.bf16.mxu0 0
  %823 = vmatpush2.bf16.msra.mxu0 0
  %824 = vmatprep.mubr.bf16.mxu0 0
  %825 = vmatmul.mubr.bf16.gmra.mxu0 %v704
  %v826 = vpop.f32.mrf.mxu0
  %v827 = vadd.f32 %v728, %v826
  %v828 = vpop.f32.mrf.mxu0
  %v829 = vpop.f32.mrf.mxu0
  %v830 = vadd.f32 %v729, %v829
  %v831 = vpop.f32.mrf.mxu0
  %832 = vmatprep.mubr.bf16.mxu0 0
  %833 = vmatmul.mubr.bf16.gmra.mxu0 %v705
  %v834 = vpop.f32.mrf.mxu0
  %v835 = vadd.f32 %v730, %v834
  %v836 = vpop.f32.mrf.mxu0
  %v837 = vpop.f32.mrf.mxu0
  %v838 = vadd.f32 %v731, %v837
  %v839 = vpop.f32.mrf.mxu0
  %840 = vmatprep.mubr.bf16.mxu0 0
  %841 = vmatmul.mubr.bf16.gmra.mxu0 %v706
  %v842 = vpop.f32.mrf.mxu0
  %v843 = vadd.f32 %v732, %v842
  %v844 = vpop.f32.mrf.mxu0
  %v845 = vpop.f32.mrf.mxu0
  %v846 = vadd.f32 %v733, %v845
  %v847 = vpop.f32.mrf.mxu0
  %848 = vmatprep.mubr.bf16.mxu0 0
  %849 = vmatmul.mubr.bf16.gmra.mxu0 %v707
  %v850 = vpop.f32.mrf.mxu0
  %v851 = vadd.f32 %v734, %v850
  %v852 = vpop.f32.mrf.mxu0
  %v853 = vpop.f32.mrf.mxu0
  %v854 = vadd.f32 %v735, %v853
  %v855 = vpop.f32.mrf.mxu0
  %856 = vmatprep.mubr.bf16.mxu0 0
  %857 = vmatmul.mubr.bf16.gmra.mxu0 %v708
  %v858 = vpop.f32.mrf.mxu0
  %v859 = vadd.f32 %v736, %v858
  %v860 = vpop.f32.mrf.mxu0
  %v861 = vpop.f32.mrf.mxu0
  %v862 = vadd.f32 %v737, %v861
  %v863 = vpop.f32.mrf.mxu0
  %864 = vmatprep.mubr.bf16.mxu0 0
  %865 = vmatmul.mubr.bf16.gmra.mxu0 %v709
  %v866 = vpop.f32.mrf.mxu0
  %v867 = vadd.f32 %v738, %v866
  %v868 = vpop.f32.mrf.mxu0
  %v869 = vpop.f32.mrf.mxu0
  %v870 = vadd.f32 %v739, %v869
  %v871 = vpop.f32.mrf.mxu0
  %872 = vmatprep.mubr.bf16.mxu0 0
  %873 = vmatmul.mubr.bf16.gmra.mxu0 %v710
  %v874 = vpop.f32.mrf.mxu0
  %v875 = vadd.f32 %v740, %v874
  %v876 = vpop.f32.mrf.mxu0
  %v877 = vpop.f32.mrf.mxu0
  %v878 = vadd.f32 %v741, %v877
  %v879 = vpop.f32.mrf.mxu0
  %880 = vmatprep.mubr.bf16.mxu0 0
  %881 = vmatmul.mubr.bf16.gmra.mxu0 %v711
  %v882 = vpop.f32.mrf.mxu0
  %v883 = vadd.f32 %v742, %v882
  %v884 = vpop.f32.mrf.mxu0
  %v885 = vpop.f32.mrf.mxu0
  %v886 = vadd.f32 %v743, %v885
  %v887 = vpop.f32.mrf.mxu0
  %888 = vdwg.mxu0
  %889 = vmax.xlane.f32.xlu0 %v827
  %v890 = vpop.xlane.xlu0 %889
  %891 = vmax.xlane.f32.xlu0 %v830
  %v892 = vpop.xlane.xlu0 %891
  %893 = vmax.xlane.f32.xlu0 %v835
  %v894 = vpop.xlane.xlu0 %893
  %895 = vmax.xlane.f32.xlu0 %v838
  %v896 = vpop.xlane.xlu0 %895
  %897 = vmax.xlane.f32.xlu0 %v843
  %v898 = vpop.xlane.xlu0 %897
  %899 = vmax.xlane.f32.xlu0 %v846
  %v900 = vpop.xlane.xlu0 %899
  %901 = vmax.xlane.f32.xlu0 %v851
  %v902 = vpop.xlane.xlu0 %901
  %903 = vmax.xlane.f32.xlu0 %v854
  %v904 = vpop.xlane.xlu0 %903
  %905 = vmax.xlane.f32.xlu0 %v859
  %v906 = vpop.xlane.xlu0 %905
  %907 = vmax.xlane.f32.xlu0 %v862
  %v908 = vpop.xlane.xlu0 %907
  %909 = vmax.xlane.f32.xlu0 %v867
  %v910 = vpop.xlane.xlu0 %909
  %911 = vmax.xlane.f32.xlu0 %v870
  %v912 = vpop.xlane.xlu0 %911
  %913 = vmax.xlane.f32.xlu0 %v875
  %v914 = vpop.xlane.xlu0 %913
  %915 = vmax.xlane.f32.xlu0 %v878
  %v916 = vpop.xlane.xlu0 %915
  %917 = vmax.xlane.f32.xlu0 %v883
  %v918 = vpop.xlane.xlu0 %917
  %919 = vmax.xlane.f32.xlu0 %v886
  %v920 = vpop.xlane.xlu0 %919
  %v921 = vsub.f32 %v827, %v890
  %v922 = vsub.f32 %v830, %v892
  %v923 = vsub.f32 %v835, %v894
  %v924 = vsub.f32 %v838, %v896
  %v925 = vsub.f32 %v843, %v898
  %v926 = vsub.f32 %v846, %v900
  %v927 = vsub.f32 %v851, %v902
  %v928 = vsub.f32 %v854, %v904
  %v929 = vsub.f32 %v859, %v906
  %v930 = vsub.f32 %v862, %v908
  %v931 = vsub.f32 %v867, %v910
  %v932 = vsub.f32 %v870, %v912
  %v933 = vsub.f32 %v875, %v914
  %v934 = vsub.f32 %v878, %v916
  %v935 = vsub.f32 %v883, %v918
  %v936 = vsub.f32 %v886, %v920
  %v937 = vmul.f32 %v921, 1.442695
  %v938 = vpow.pop %v937
  %v939 = vmul.f32 %v922, 1.442695
  %v940 = vpow.pop %v939
  %v941 = vmul.f32 %v923, 1.442695
  %v942 = vpow.pop %v941
  %v943 = vmul.f32 %v924, 1.442695
  %v944 = vpow.pop %v943
  %v945 = vmul.f32 %v925, 1.442695
  %v946 = vpow.pop %v945
  %v947 = vmul.f32 %v926, 1.442695
  %v948 = vpow.pop %v947
  %v949 = vmul.f32 %v927, 1.442695
  %v950 = vpow.pop %v949
  %v951 = vmul.f32 %v928, 1.442695
  %v952 = vpow.pop %v951
  %v953 = vmul.f32 %v929, 1.442695
  %v954 = vpow.pop %v953
  %v955 = vmul.f32 %v930, 1.442695
  %v956 = vpow.pop %v955
  %v957 = vmul.f32 %v931, 1.442695
  %v958 = vpow.pop %v957
  %v959 = vmul.f32 %v932, 1.442695
  %v960 = vpow.pop %v959
  %v961 = vmul.f32 %v933, 1.442695
  %v962 = vpow.pop %v961
  %v963 = vmul.f32 %v934, 1.442695
  %v964 = vpow.pop %v963
  %v965 = vmul.f32 %v935, 1.442695
  %v966 = vpow.pop %v965
  %v967 = vmul.f32 %v936, 1.442695
  %v968 = vpow.pop %v967
  %969 = vadd.xlane.f32.xlu0 %v938
  %v970 = vpop.xlane.xlu0 %969
  %971 = vadd.xlane.f32.xlu0 %v940
  %v972 = vpop.xlane.xlu0 %971
  %973 = vadd.xlane.f32.xlu0 %v942
  %v974 = vpop.xlane.xlu0 %973
  %975 = vadd.xlane.f32.xlu0 %v944
  %v976 = vpop.xlane.xlu0 %975
  %977 = vadd.xlane.f32.xlu0 %v946
  %v978 = vpop.xlane.xlu0 %977
  %979 = vadd.xlane.f32.xlu0 %v948
  %v980 = vpop.xlane.xlu0 %979
  %981 = vadd.xlane.f32.xlu0 %v950
  %v982 = vpop.xlane.xlu0 %981
  %983 = vadd.xlane.f32.xlu0 %v952
  %v984 = vpop.xlane.xlu0 %983
  %985 = vadd.xlane.f32.xlu0 %v954
  %v986 = vpop.xlane.xlu0 %985
  %987 = vadd.xlane.f32.xlu0 %v956
  %v988 = vpop.xlane.xlu0 %987
  %989 = vadd.xlane.f32.xlu0 %v958
  %v990 = vpop.xlane.xlu0 %989
  %991 = vadd.xlane.f32.xlu0 %v960
  %v992 = vpop.xlane.xlu0 %991
  %993 = vadd.xlane.f32.xlu0 %v962
  %v994 = vpop.xlane.xlu0 %993
  %995 = vadd.xlane.f32.xlu0 %v964
  %v996 = vpop.xlane.xlu0 %995
  %997 = vadd.xlane.f32.xlu0 %v966
  %v998 = vpop.xlane.xlu0 %997
  %999 = vadd.xlane.f32.xlu0 %v968
  %v1000 = vpop.xlane.xlu0 %999
  %v1001 = vlog2.pop %v970
  %v1002 = vmul.f32 %v1001, 0.6931472
  %v1003 = vlog2.pop %v972
  %v1004 = vmul.f32 %v1003, 0.6931472
  %v1005 = vlog2.pop %v974
  %v1006 = vmul.f32 %v1005, 0.6931472
  %v1007 = vlog2.pop %v976
  %v1008 = vmul.f32 %v1007, 0.6931472
  %v1009 = vlog2.pop %v978
  %v1010 = vmul.f32 %v1009, 0.6931472
  %v1011 = vlog2.pop %v980
  %v1012 = vmul.f32 %v1011, 0.6931472
  %v1013 = vlog2.pop %v982
  %v1014 = vmul.f32 %v1013, 0.6931472
  %v1015 = vlog2.pop %v984
  %v1016 = vmul.f32 %v1015, 0.6931472
  %v1017 = vlog2.pop %v986
  %v1018 = vmul.f32 %v1017, 0.6931472
  %v1019 = vlog2.pop %v988
  %v1020 = vmul.f32 %v1019, 0.6931472
  %v1021 = vlog2.pop %v990
  %v1022 = vmul.f32 %v1021, 0.6931472
  %v1023 = vlog2.pop %v992
  %v1024 = vmul.f32 %v1023, 0.6931472
  %v1025 = vlog2.pop %v994
  %v1026 = vmul.f32 %v1025, 0.6931472
  %v1027 = vlog2.pop %v996
  %v1028 = vmul.f32 %v1027, 0.6931472
  %v1029 = vlog2.pop %v998
  %v1030 = vmul.f32 %v1029, 0.6931472
  %v1031 = vlog2.pop %v1000
  %v1032 = vmul.f32 %v1031, 0.6931472
  %v1033 = vsub.f32 %v921, %v1002
  %v1034 = vsub.f32 %v922, %v1004
  %v1035 = vsub.f32 %v923, %v1006
  %v1036 = vsub.f32 %v924, %v1008
  %v1037 = vsub.f32 %v925, %v1010
  %v1038 = vsub.f32 %v926, %v1012
  %v1039 = vsub.f32 %v927, %v1014
  %v1040 = vsub.f32 %v928, %v1016
  %v1041 = vsub.f32 %v929, %v1018
  %v1042 = vsub.f32 %v930, %v1020
  %v1043 = vsub.f32 %v931, %v1022
  %v1044 = vsub.f32 %v932, %v1024
  %v1045 = vsub.f32 %v933, %v1026
  %v1046 = vsub.f32 %v934, %v1028
  %v1047 = vsub.f32 %v935, %v1030
  %v1048 = vsub.f32 %v936, %v1032
  %1049 = vst [vmem:[%s9] sm:$0xff] %v1033
  %1050 = vst [vmem:[%s9 + $0x8] sm:$0xff] %v1034
  %1051 = vst [vmem:[%s9 + $0x10] sm:$0xff] %v1035
  %1052 = vst [vmem:[%s9 + $0x18] sm:$0xff] %v1036
  %1053 = vst [vmem:[%s9 + $0x20] sm:$0xff] %v1037
  %1054 = vst [vmem:[%s9 + $0x28] sm:$0xff] %v1038
  %1055 = vst [vmem:[%s9 + $0x30] sm:$0xff] %v1039
  %1056 = vst [vmem:[%s9 + $0x38] sm:$0xff] %v1040
  %1057 = vst [vmem:[%s9 + $0x40] sm:$0xff] %v1041
  %1058 = vst [vmem:[%s9 + $0x48] sm:$0xff] %v1042
  %1059 = vst [vmem:[%s9 + $0x50] sm:$0xff] %v1043
  %1060 = vst [vmem:[%s9 + $0x58] sm:$0xff] %v1044
  %1061 = vst [vmem:[%s9 + $0x60] sm:$0xff] %v1045
  %1062 = vst [vmem:[%s9 + $0x68] sm:$0xff] %v1046
  %1063 = vst [vmem:[%s9 + $0x70] sm:$0xff] %v1047
  %1064 = vst [vmem:[%s9 + $0x78] sm:$0xff] %v1048
  // Predicated region
  $region34: #{gcn_forward.1} parent=0 // pred_check
    _
  $region35: #{gcn_forward.1} parent=0 // pred_check_branch
    %1066 = sbr.rel (0) target = $region37
  $region36: #{gcn_forward.1} parent=0 // pred_region
    _
  $region37: #{gcn_forward.1} parent=0 // pred_fallthru
    _
  // Predicated region
  $region38: #{gcn_forward.1} parent=0 // pred_check
    _
  $region39: #{gcn_forward.1} parent=0 // pred_check_branch
    %1068 = sbr.rel (0) target = $region41
  $region40: #{gcn_forward.1} parent=0 // pred_region
    _
  $region41: #{gcn_forward.1} parent=0 // pred_fallthru
    _
  // Predicated region
  $region42: #{gcn_forward.1} parent=0 // pred_check
    _
  $region43: #{gcn_forward.1} parent=0 // pred_check_branch
    %1070 = sbr.rel (0) target = $region45
  $region44: #{gcn_forward.1} parent=0 // pred_region
    _
  $region45: #{gcn_forward.1} parent=0 // pred_fallthru
    _
  // Predicated region
  $region46: #{gcn_forward.1} parent=0 // pred_check
    _
  $region47: #{gcn_forward.1} parent=0 // pred_check_branch
    %1072 = sbr.rel (0) target = $region49
  $region48: #{gcn_forward.1} parent=0 // pred_region
    _
  $region49: #{gcn_forward.1} parent=0 // pred_fallthru
    _

</llo_original>
